<compile_context>
chip_gen: v7x
topology: tpu7x:2x2x1
jax: 0.10.0
libtpu: 0.0.40
codegen_flags: <defaults>
</compile_context>

<pallas_src>
import math

import jax
import jax.numpy as jnp
from jax.experimental import pallas as pl
from jax.experimental.pallas import tpu as pltpu


def _round_up(x, m):
    return ((x + m - 1) // m) * m


# ---------------------------------------------------------------------------
# Recurrent Pallas kernel: only the h-dependent math runs here.
# ---------------------------------------------------------------------------
def grud_recurrent_kernel(pk_ref, wzr_ref, whh_ref, out_ref, h_scr):
    # pk_ref : (TT, 4, BB, Hp)  channels = [pre_z, pre_r, pre_h, delta_h]
    # wzr_ref: (Hp, 2*Hp)       fused [Wz_h | Wr_h] (h -> z,r)
    # whh_ref: (Hp, Hp)         Wh_h ((r*h) -> h_tilde)
    # out_ref: (TT, BB, Hp)
    # h_scr  : (BB, Hp)         hidden state carried across the time grid axis

    @pl.when(pl.program_id(1) == 0)
    def _():
        h_scr[...] = jnp.zeros_like(h_scr)

    tt_steps = out_ref.shape[0]
    hp = h_scr.shape[1]

    # Hoist constant weight loads out of the inner loop.
    w_zr = wzr_ref[...]
    w_hh = whh_ref[...]

    def body(tt, h):
        blk = pk_ref[tt]          # (4, BB, Hp) — one dynamic load, static splits
        pre_z = blk[0]
        pre_r = blk[1]
        pre_ht = blk[2]
        dlt_h = blk[3]

        h = dlt_h * h
        zr = jnp.dot(h, w_zr, preferred_element_type=jnp.float32)   # (BB, 2*Hp)
        z = jax.nn.sigmoid(pre_z + zr[:, :hp])
        r = jax.nn.sigmoid(pre_r + zr[:, hp:])
        h_tilde = jnp.tanh(
            pre_ht + jnp.dot(r * h, w_hh, preferred_element_type=jnp.float32)
        )
        h = (1.0 - z) * h + z * h_tilde
        out_ref[tt] = h.astype(out_ref.dtype)
        return h

    h_scr[...] = jax.lax.fori_loop(0, tt_steps, body, h_scr[...], unroll=True)


# ---------------------------------------------------------------------------
# Wrapper: precompute (parallel, XLA) + recurrent Pallas kernel.
# ---------------------------------------------------------------------------
def grud_forward(inp, x_mean, params, *, tt=4):
    """inp: (B, 4, T, D) float32; x_mean: (B, T, D); returns (B, T, H)."""
    B, C, T, D = inp.shape
    assert C == 4
    H = params["zl_w_t"].shape[1]
    assert D == H, "GRUD_RNN as written requires input_size == hidden_size"

    X, Xl, M, Dl = inp[:, 0], inp[:, 1], inp[:, 2], inp[:, 3]   # (B, T, D)

    # ---------------- h-independent precompute (big parallel matmuls) -------
    delta_x = jnp.exp(-jnp.maximum(0.0, Dl * params["gx_diag"] + params["gx_b"]))
    delta_h = jnp.exp(
        -jnp.maximum(
            0.0,
            jnp.einsum("btd,de->bte", Dl, params["gh_w_t"], precision="highest")
            + params["gh_b"],
        )
    )
    x_hat = M * X + (1.0 - M) * (delta_x * Xl + (1.0 - delta_x) * x_mean)

    # Split the (Dc, H) gate weights into x / h / mask blocks.
    def split(w_t):
        return w_t[:D], w_t[D : D + H], w_t[D + H :]

    wz_x, wz_h, wz_m = split(params["zl_w_t"])
    wr_x, wr_h, wr_m = split(params["rl_w_t"])
    wh_x, wh_h, wh_m = split(params["hl_w_t"])

    # One fused (2D, 3H) matmul for all x_hat/mask gate contributions (+bias).
    w_xm_all = jnp.concatenate(
        [
            jnp.concatenate([wz_x, wz_m], axis=0),
            jnp.concatenate([wr_x, wr_m], axis=0),
            jnp.concatenate([wh_x, wh_m], axis=0),
        ],
        axis=1,
    )  # (2D, 3H)
    b_all = jnp.concatenate(
        [params["zl_b"], params["rl_b"], params["hl_b"]], axis=1
    )  # (1, 3H)

    xm = jnp.concatenate([x_hat, M], axis=-1)                       # (B, T, 2D)
    pre_all = (
        jnp.einsum("btd,dh->bth", xm, w_xm_all, precision="highest") + b_all
    )                                                               # (B, T, 3H)
    pre_z = pre_all[..., :H]
    pre_r = pre_all[..., H : 2 * H]
    pre_h = pre_all[..., 2 * H :]

    # ---------------- padding / packing for the recurrent kernel ------------
    tt = max(1, min(tt, T))
    T_pad = _round_up(T, tt)
    B_pad = _round_up(B, 8)
    if B_pad > 128:
        B_pad = _round_up(B, 128)
    BB = min(B_pad, 128)
    H_pad = _round_up(H, 128)

    # Pack [pre_z, pre_r, pre_h, delta_h] into one time-major stream.
    pk = jnp.stack([pre_z, pre_r, pre_h, delta_h], axis=1)          # (B, 4, T, H)
    pk = jnp.transpose(pk, (2, 1, 0, 3))                            # (T, 4, B, H)
    pk = jnp.pad(
        pk, ((0, T_pad - T), (0, 0), (0, B_pad - B), (0, H_pad - H))
    )

    # Fused h-dependent weights, zero-padded (padded rows/cols contribute 0).
    f32 = jnp.float32
    w_zr = (
        jnp.zeros((H_pad, 2 * H_pad), f32)
        .at[:H, :H].set(wz_h)
        .at[:H, H_pad : H_pad + H].set(wr_h)
    )
    w_hh = jnp.zeros((H_pad, H_pad), f32).at[:H, :H].set(wh_h)

    nb = B_pad // BB
    nt = T_pad // tt

    out = pl.pallas_call(
        grud_recurrent_kernel,
        out_shape=jax.ShapeDtypeStruct((T_pad, B_pad, H_pad), jnp.float32),
        grid_spec=pltpu.PrefetchScalarGridSpec(
            num_scalar_prefetch=0,
            grid=(nb, nt),
            in_specs=[
                pl.BlockSpec((tt, 4, BB, H_pad), lambda b, t: (t, 0, b, 0)),
                pl.BlockSpec((H_pad, 2 * H_pad), lambda b, t: (0, 0)),
                pl.BlockSpec((H_pad, H_pad), lambda b, t: (0, 0)),
            ],
            out_specs=pl.BlockSpec((tt, BB, H_pad), lambda b, t: (t, b, 0)),
            scratch_shapes=[pltpu.VMEM((BB, H_pad), jnp.float32)],
        ),
        compiler_params=pltpu.CompilerParams(
            # batch blocks are independent (megacore on v7x); time is recurrent
            dimension_semantics=("parallel", "arbitrary"),
            vmem_limit_bytes=64 * 1024 * 1024,
        ),
    )(pk, w_zr, w_hh)

    return jnp.transpose(out[:T, :B, :H], (1, 0, 2))                # (B, T, H)


# ---------------------------------------------------------------------------
# Parameter init mimicking PyTorch's uniform(-stdv, stdv).
# ---------------------------------------------------------------------------
def init_params(key, input_size, hidden_size):
    D, H = input_size, hidden_size
    Dc = D + H + D
    keys = jax.random.split(key, 10)

    def u(k, shape, fan_in):
        s = 1.0 / math.sqrt(fan_in)
        return jax.random.uniform(k, shape, jnp.float32, -s, s)

    # FilterMatrix gamma_x_l: weight (D, D) masked by identity -> diagonal.
    gx_w_full = u(keys[0], (D, D), D)
    gx_diag = jnp.diagonal(gx_w_full).reshape(1, D)
    gx_b = u(keys[1], (1, D), D)

    # gamma_h_l: Linear(D, D). Stored pre-transposed as (D_in, D_out).
    gh_w = u(keys[2], (D, D), D)
    gh_b = u(keys[3], (1, D), D)

    # zl / rl / hl: Linear(Dc, H). Stored pre-transposed as (Dc, H).
    zl_w = u(keys[4], (H, Dc), Dc)
    zl_b = u(keys[5], (1, H), Dc)
    rl_w = u(keys[6], (H, Dc), Dc)
    rl_b = u(keys[7], (1, H), Dc)
    hl_w = u(keys[8], (H, Dc), Dc)
    hl_b = u(keys[9], (1, H), Dc)

    return {
        "gx_diag": gx_diag, "gx_b": gx_b,
        "gh_w_t": gh_w.T, "gh_b": gh_b,
        "zl_w_t": zl_w.T, "zl_b": zl_b,
        "rl_w_t": rl_w.T, "rl_b": rl_b,
        "hl_w_t": hl_w.T, "hl_b": hl_b,
    }


# ---------------------------------------------------------------------------
# Pure-JAX reference mirroring the PyTorch forward, for validation.
# ---------------------------------------------------------------------------
def grud_reference(inp, x_mean, params):
    B, _, T, D = inp.shape
    H = params["zl_w_t"].shape[1]
    X, Xl, M, Dl = inp[:, 0], inp[:, 1], inp[:, 2], inp[:, 3]
    hi = jax.lax.Precision.HIGHEST
    h = jnp.zeros((B, H), jnp.float32)
    outs = []
    for i in range(T):
        x, xl, m, dl, xm = X[:, i], Xl[:, i], M[:, i], Dl[:, i], x_mean[:, i]
        delta_x = jnp.exp(-jnp.maximum(0.0, dl * params["gx_diag"] + params["gx_b"]))
        delta_h = jnp.exp(
            -jnp.maximum(0.0, jnp.dot(dl, params["gh_w_t"], precision=hi) + params["gh_b"])
        )
        x_hat = m * x + (1 - m) * (delta_x * xl + (1 - delta_x) * xm)
        h = delta_h * h
        comb = jnp.concatenate([x_hat, h, m], axis=1)
        z = jax.nn.sigmoid(jnp.dot(comb, params["zl_w_t"], precision=hi) + params["zl_b"])
        r = jax.nn.sigmoid(jnp.dot(comb, params["rl_w_t"], precision=hi) + params["rl_b"])
        comb_r = jnp.concatenate([x_hat, r * h, m], axis=1)
        h_tilde = jnp.tanh(jnp.dot(comb_r, params["hl_w_t"], precision=hi) + params["hl_b"])
        h = (1 - z) * h + z * h_tilde
        outs.append(h)
    return jnp.stack(outs, axis=1)


if __name__ == "__main__":
    B, T, D = 2, 8, 16
    H = D  # module requires input_size == hidden_size

    key = jax.random.PRNGKey(0)
    k_inp, k_mean, k_param = jax.random.split(key, 3)

    inp = jax.random.normal(k_inp, (B, 4, T, D), jnp.float32)
    # Make the Mask channel binary and Delta non-negative (as in GRU-D data).
    inp = inp.at[:, 2].set((inp[:, 2] > 0.0).astype(jnp.float32))
    inp = inp.at[:, 3].set(jnp.abs(inp[:, 3]))
    x_mean = jax.random.normal(k_mean, (B, T, D), jnp.float32)

    params = init_params(k_param, D, H)

    out = jax.jit(grud_forward)(inp, x_mean, params)
    out = jax.block_until_ready(out)

    ref = grud_reference(inp, x_mean, params)
    assert out.shape == (B, T, H)
    # Precompute/recurrent split changes summation order slightly vs the
    # monolithic reference matmuls -> slightly looser tolerance than 1e-5.
    assert jnp.allclose(out, ref, atol=1e-4, rtol=1e-4), "mismatch vs reference"

    print("KERNEL_OK")
</pallas_src>

<mosaic_0001>
module attributes {stable_mosaic.version = 11 : i64} {
  func.func @grud_recurrent_kernel(%arg0: i32, %arg1: i32, %arg2: memref<4x4x8x128xf32, #tpu.memory_space<vmem>>, %arg3: memref<128x256xf32, #tpu.memory_space<vmem>>, %arg4: memref<128x128xf32, #tpu.memory_space<vmem>>, %arg5: memref<4x8x128xf32, #tpu.memory_space<vmem>>, %arg6: memref<8x128xf32, #tpu.memory_space<vmem>>) attributes {dimension_semantics = [#tpu.dimension_semantics<parallel>, #tpu.dimension_semantics<arbitrary>], iteration_bounds = array<i64: 1, 2>, scalar_prefetch = 0 : i64, scratch_operands = 1 : i64, tpu.core_type = #tpu.core_type<tc>, window_params = [{transform_indices = @transform_0, window_bounds = array<i64: 4, 4, 8, 128>}, {pipeline_mode = #tpu.pipeline_mode<synchronous>, transform_indices = @transform_1, window_bounds = array<i64: 128, 256>}, {pipeline_mode = #tpu.pipeline_mode<synchronous>, transform_indices = @transform_2, window_bounds = array<i64: 128, 128>}, {transform_indices = @transform_3, window_bounds = array<i64: 4, 8, 128>}]} {
    %c0_i32 = arith.constant 0 : i32
    %0 = arith.cmpi eq, %arg1, %c0_i32 : i32
    %1 = arith.extui %0 : i1 to i32
    %c0_i32_0 = arith.constant 0 : i32
    %2 = arith.cmpi ne, %1, %c0_i32_0 : i32
    scf.if %2 {
      %cst_48 = arith.constant 0.000000e+00 : f32
      %167 = vector.broadcast %cst_48 : f32 to vector<8x128xf32>
      %c0_49 = arith.constant 0 : index
      %c0_50 = arith.constant 0 : index
      %168 = vector.load %arg6[%c0_49, %c0_50] : memref<8x128xf32, #tpu.memory_space<vmem>>, vector<8x128xf32>
      tpu.vector_store %arg6[%c0_49, %c0_50], %167 {strides = array<i32>} : memref<8x128xf32, #tpu.memory_space<vmem>>, vector<8x128xf32>,
    } else {
    }
    %c0 = arith.constant 0 : index
    %c0_1 = arith.constant 0 : index
    %3 = vector.load %arg3[%c0, %c0_1] : memref<128x256xf32, #tpu.memory_space<vmem>>, vector<128x256xf32>
    %c0_2 = arith.constant 0 : index
    %c0_3 = arith.constant 0 : index
    %4 = vector.load %arg4[%c0_2, %c0_3] : memref<128x128xf32, #tpu.memory_space<vmem>>, vector<128x128xf32>
    %c0_4 = arith.constant 0 : index
    %c0_5 = arith.constant 0 : index
    %5 = vector.load %arg6[%c0_4, %c0_5] : memref<8x128xf32, #tpu.memory_space<vmem>>, vector<8x128xf32>
    %c0_i32_6 = arith.constant 0 : i32
    %6 = arith.index_cast %c0_i32_6 : i32 to index
    %c0_7 = arith.constant 0 : index
    %c0_8 = arith.constant 0 : index
    %c0_9 = arith.constant 0 : index
    %7 = vector.load %arg2[%6, %c0_7, %c0_8, %c0_9] : memref<4x4x8x128xf32, #tpu.memory_space<vmem>>, vector<1x4x8x128xf32>
    %8 = vector.shape_cast %7 : vector<1x4x8x128xf32> to vector<4x8x128xf32>
    %9 = vector.extract_strided_slice %8 {offsets = [0, 0, 0], sizes = [1, 8, 128], strides = [1, 1, 1]} : vector<4x8x128xf32> to vector<1x8x128xf32>
    %10 = vector.shape_cast %9 : vector<1x8x128xf32> to vector<8x128xf32>
    %11 = vector.extract_strided_slice %8 {offsets = [1, 0, 0], sizes = [1, 8, 128], strides = [1, 1, 1]} : vector<4x8x128xf32> to vector<1x8x128xf32>
    %12 = vector.shape_cast %11 : vector<1x8x128xf32> to vector<8x128xf32>
    %13 = vector.extract_strided_slice %8 {offsets = [2, 0, 0], sizes = [1, 8, 128], strides = [1, 1, 1]} : vector<4x8x128xf32> to vector<1x8x128xf32>
    %14 = vector.shape_cast %13 : vector<1x8x128xf32> to vector<8x128xf32>
    %15 = vector.extract_strided_slice %8 {offsets = [3, 0, 0], sizes = [1, 8, 128], strides = [1, 1, 1]} : vector<4x8x128xf32> to vector<1x8x128xf32>
    %16 = vector.shape_cast %15 : vector<1x8x128xf32> to vector<8x128xf32>
    %17 = arith.mulf %16, %5 : vector<8x128xf32>
    %cst = arith.constant dense<0.000000e+00> : vector<8x256xf32>
    %18 = tpu.matmul %17, %3, %cst {dimension_numbers = #tpu.dot_dimension_numbers<[1], [0], [0], [1], [0, 0, 1, 1], [], []>} : vector<8x128xf32>, vector<128x256xf32>, vector<8x256xf32> -> vector<8x256xf32>
    %19 = vector.extract_strided_slice %18 {offsets = [0, 0], sizes = [8, 128], strides = [1, 1]} : vector<8x256xf32> to vector<8x128xf32>
    %20 = arith.addf %10, %19 : vector<8x128xf32>
    %21 = arith.negf %20 : vector<8x128xf32>
    %22 = math.exp %21 : vector<8x128xf32>
    %cst_10 = arith.constant 1.000000e+00 : f32
    %23 = vector.broadcast %cst_10 : f32 to vector<8x128xf32>
    %24 = arith.addf %23, %22 : vector<8x128xf32>
    %25 = arith.divf %23, %24 : vector<8x128xf32>
    %26 = vector.extract_strided_slice %18 {offsets = [0, 128], sizes = [8, 128], strides = [1, 1]} : vector<8x256xf32> to vector<8x128xf32>
    %27 = arith.addf %12, %26 : vector<8x128xf32>
    %28 = arith.negf %27 : vector<8x128xf32>
    %29 = math.exp %28 : vector<8x128xf32>
    %cst_11 = arith.constant 1.000000e+00 : f32
    %30 = vector.broadcast %cst_11 : f32 to vector<8x128xf32>
    %31 = arith.addf %30, %29 : vector<8x128xf32>
    %32 = arith.divf %30, %31 : vector<8x128xf32>
    %33 = arith.mulf %32, %17 : vector<8x128xf32>
    %cst_12 = arith.constant dense<0.000000e+00> : vector<8x128xf32>
    %34 = tpu.matmul %33, %4, %cst_12 {dimension_numbers = #tpu.dot_dimension_numbers<[1], [0], [0], [1], [0, 0, 1, 1], [], []>} : vector<8x128xf32>, vector<128x128xf32>, vector<8x128xf32> -> vector<8x128xf32>
    %35 = arith.addf %14, %34 : vector<8x128xf32>
    %36 = math.tanh %35 : vector<8x128xf32>
    %cst_13 = arith.constant 1.000000e+00 : f32
    %37 = vector.broadcast %cst_13 : f32 to vector<8x128xf32>
    %38 = arith.subf %37, %25 : vector<8x128xf32>
    %39 = arith.mulf %38, %17 : vector<8x128xf32>
    %40 = arith.mulf %25, %36 : vector<8x128xf32>
    %41 = arith.addf %39, %40 : vector<8x128xf32>
    %42 = arith.index_cast %c0_i32_6 : i32 to index
    %c0_14 = arith.constant 0 : index
    %c0_15 = arith.constant 0 : index
    %43 = vector.load %arg5[%42, %c0_14, %c0_15] : memref<4x8x128xf32, #tpu.memory_space<vmem>>, vector<1x8x128xf32>
    %44 = vector.shape_cast %43 : vector<1x8x128xf32> to vector<8x128xf32>
    %45 = vector.shape_cast %41 : vector<8x128xf32> to vector<1x8x128xf32>
    tpu.vector_store %arg5[%42, %c0_14, %c0_15], %45 {strides = array<i32>} : memref<4x8x128xf32, #tpu.memory_space<vmem>>, vector<1x8x128xf32>,
    %c1_i32 = arith.constant 1 : i32
    %46 = arith.index_cast %c1_i32 : i32 to index
    %c0_16 = arith.constant 0 : index
    %c0_17 = arith.constant 0 : index
    %c0_18 = arith.constant 0 : index
    %47 = vector.load %arg2[%46, %c0_16, %c0_17, %c0_18] : memref<4x4x8x128xf32, #tpu.memory_space<vmem>>, vector<1x4x8x128xf32>
    %48 = vector.shape_cast %47 : vector<1x4x8x128xf32> to vector<4x8x128xf32>
    %49 = vector.extract_strided_slice %48 {offsets = [0, 0, 0], sizes = [1, 8, 128], strides = [1, 1, 1]} : vector<4x8x128xf32> to vector<1x8x128xf32>
    %50 = vector.shape_cast %49 : vector<1x8x128xf32> to vector<8x128xf32>
    %51 = vector.extract_strided_slice %48 {offsets = [1, 0, 0], sizes = [1, 8, 128], strides = [1, 1, 1]} : vector<4x8x128xf32> to vector<1x8x128xf32>
    %52 = vector.shape_cast %51 : vector<1x8x128xf32> to vector<8x128xf32>
    %53 = vector.extract_strided_slice %48 {offsets = [2, 0, 0], sizes = [1, 8, 128], strides = [1, 1, 1]} : vector<4x8x128xf32> to vector<1x8x128xf32>
    %54 = vector.shape_cast %53 : vector<1x8x128xf32> to vector<8x128xf32>
    %55 = vector.extract_strided_slice %48 {offsets = [3, 0, 0], sizes = [1, 8, 128], strides = [1, 1, 1]} : vector<4x8x128xf32> to vector<1x8x128xf32>
    %56 = vector.shape_cast %55 : vector<1x8x128xf32> to vector<8x128xf32>
    %57 = arith.mulf %56, %41 : vector<8x128xf32>
    %cst_19 = arith.constant dense<0.000000e+00> : vector<8x256xf32>
    %58 = tpu.matmul %57, %3, %cst_19 {dimension_numbers = #tpu.dot_dimension_numbers<[1], [0], [0], [1], [0, 0, 1, 1], [], []>} : vector<8x128xf32>, vector<128x256xf32>, vector<8x256xf32> -> vector<8x256xf32>
    %59 = vector.extract_strided_slice %58 {offsets = [0, 0], sizes = [8, 128], strides = [1, 1]} : vector<8x256xf32> to vector<8x128xf32>
    %60 = arith.addf %50, %59 : vector<8x128xf32>
    %61 = arith.negf %60 : vector<8x128xf32>
    %62 = math.exp %61 : vector<8x128xf32>
    %cst_20 = arith.constant 1.000000e+00 : f32
    %63 = vector.broadcast %cst_20 : f32 to vector<8x128xf32>
    %64 = arith.addf %63, %62 : vector<8x128xf32>
    %65 = arith.divf %63, %64 : vector<8x128xf32>
    %66 = vector.extract_strided_slice %58 {offsets = [0, 128], sizes = [8, 128], strides = [1, 1]} : vector<8x256xf32> to vector<8x128xf32>
    %67 = arith.addf %52, %66 : vector<8x128xf32>
    %68 = arith.negf %67 : vector<8x128xf32>
    %69 = math.exp %68 : vector<8x128xf32>
    %cst_21 = arith.constant 1.000000e+00 : f32
    %70 = vector.broadcast %cst_21 : f32 to vector<8x128xf32>
    %71 = arith.addf %70, %69 : vector<8x128xf32>
    %72 = arith.divf %70, %71 : vector<8x128xf32>
    %73 = arith.mulf %72, %57 : vector<8x128xf32>
    %cst_22 = arith.constant dense<0.000000e+00> : vector<8x128xf32>
    %74 = tpu.matmul %73, %4, %cst_22 {dimension_numbers = #tpu.dot_dimension_numbers<[1], [0], [0], [1], [0, 0, 1, 1], [], []>} : vector<8x128xf32>, vector<128x128xf32>, vector<8x128xf32> -> vector<8x128xf32>
    %75 = arith.addf %54, %74 : vector<8x128xf32>
    %76 = math.tanh %75 : vector<8x128xf32>
    %cst_23 = arith.constant 1.000000e+00 : f32
    %77 = vector.broadcast %cst_23 : f32 to vector<8x128xf32>
    %78 = arith.subf %77, %65 : vector<8x128xf32>
    %79 = arith.mulf %78, %57 : vector<8x128xf32>
    %80 = arith.mulf %65, %76 : vector<8x128xf32>
    %81 = arith.addf %79, %80 : vector<8x128xf32>
    %82 = arith.index_cast %c1_i32 : i32 to index
    %c0_24 = arith.constant 0 : index
    %c0_25 = arith.constant 0 : index
    %83 = vector.load %arg5[%82, %c0_24, %c0_25] : memref<4x8x128xf32, #tpu.memory_space<vmem>>, vector<1x8x128xf32>
    %84 = vector.shape_cast %83 : vector<1x8x128xf32> to vector<8x128xf32>
    %85 = vector.shape_cast %81 : vector<8x128xf32> to vector<1x8x128xf32>
    tpu.vector_store %arg5[%82, %c0_24, %c0_25], %85 {strides = array<i32>} : memref<4x8x128xf32, #tpu.memory_space<vmem>>, vector<1x8x128xf32>,
    %c2_i32 = arith.constant 2 : i32
    %86 = arith.index_cast %c2_i32 : i32 to index
    %c0_26 = arith.constant 0 : index
    %c0_27 = arith.constant 0 : index
    %c0_28 = arith.constant 0 : index
    %87 = vector.load %arg2[%86, %c0_26, %c0_27, %c0_28] : memref<4x4x8x128xf32, #tpu.memory_space<vmem>>, vector<1x4x8x128xf32>
    %88 = vector.shape_cast %87 : vector<1x4x8x128xf32> to vector<4x8x128xf32>
    %89 = vector.extract_strided_slice %88 {offsets = [0, 0, 0], sizes = [1, 8, 128], strides = [1, 1, 1]} : vector<4x8x128xf32> to vector<1x8x128xf32>
    %90 = vector.shape_cast %89 : vector<1x8x128xf32> to vector<8x128xf32>
    %91 = vector.extract_strided_slice %88 {offsets = [1, 0, 0], sizes = [1, 8, 128], strides = [1, 1, 1]} : vector<4x8x128xf32> to vector<1x8x128xf32>
    %92 = vector.shape_cast %91 : vector<1x8x128xf32> to vector<8x128xf32>
    %93 = vector.extract_strided_slice %88 {offsets = [2, 0, 0], sizes = [1, 8, 128], strides = [1, 1, 1]} : vector<4x8x128xf32> to vector<1x8x128xf32>
    %94 = vector.shape_cast %93 : vector<1x8x128xf32> to vector<8x128xf32>
    %95 = vector.extract_strided_slice %88 {offsets = [3, 0, 0], sizes = [1, 8, 128], strides = [1, 1, 1]} : vector<4x8x128xf32> to vector<1x8x128xf32>
    %96 = vector.shape_cast %95 : vector<1x8x128xf32> to vector<8x128xf32>
    %97 = arith.mulf %96, %81 : vector<8x128xf32>
    %cst_29 = arith.constant dense<0.000000e+00> : vector<8x256xf32>
    %98 = tpu.matmul %97, %3, %cst_29 {dimension_numbers = #tpu.dot_dimension_numbers<[1], [0], [0], [1], [0, 0, 1, 1], [], []>} : vector<8x128xf32>, vector<128x256xf32>, vector<8x256xf32> -> vector<8x256xf32>
    %99 = vector.extract_strided_slice %98 {offsets = [0, 0], sizes = [8, 128], strides = [1, 1]} : vector<8x256xf32> to vector<8x128xf32>
    %100 = arith.addf %90, %99 : vector<8x128xf32>
    %101 = arith.negf %100 : vector<8x128xf32>
    %102 = math.exp %101 : vector<8x128xf32>
    %cst_30 = arith.constant 1.000000e+00 : f32
    %103 = vector.broadcast %cst_30 : f32 to vector<8x128xf32>
    %104 = arith.addf %103, %102 : vector<8x128xf32>
    %105 = arith.divf %103, %104 : vector<8x128xf32>
    %106 = vector.extract_strided_slice %98 {offsets = [0, 128], sizes = [8, 128], strides = [1, 1]} : vector<8x256xf32> to vector<8x128xf32>
    %107 = arith.addf %92, %106 : vector<8x128xf32>
    %108 = arith.negf %107 : vector<8x128xf32>
    %109 = math.exp %108 : vector<8x128xf32>
    %cst_31 = arith.constant 1.000000e+00 : f32
    %110 = vector.broadcast %cst_31 : f32 to vector<8x128xf32>
    %111 = arith.addf %110, %109 : vector<8x128xf32>
    %112 = arith.divf %110, %111 : vector<8x128xf32>
    %113 = arith.mulf %112, %97 : vector<8x128xf32>
    %cst_32 = arith.constant dense<0.000000e+00> : vector<8x128xf32>
    %114 = tpu.matmul %113, %4, %cst_32 {dimension_numbers = #tpu.dot_dimension_numbers<[1], [0], [0], [1], [0, 0, 1, 1], [], []>} : vector<8x128xf32>, vector<128x128xf32>, vector<8x128xf32> -> vector<8x128xf32>
    %115 = arith.addf %94, %114 : vector<8x128xf32>
    %116 = math.tanh %115 : vector<8x128xf32>
    %cst_33 = arith.constant 1.000000e+00 : f32
    %117 = vector.broadcast %cst_33 : f32 to vector<8x128xf32>
    %118 = arith.subf %117, %105 : vector<8x128xf32>
    %119 = arith.mulf %118, %97 : vector<8x128xf32>
    %120 = arith.mulf %105, %116 : vector<8x128xf32>
    %121 = arith.addf %119, %120 : vector<8x128xf32>
    %122 = arith.index_cast %c2_i32 : i32 to index
    %c0_34 = arith.constant 0 : index
    %c0_35 = arith.constant 0 : index
    %123 = vector.load %arg5[%122, %c0_34, %c0_35] : memref<4x8x128xf32, #tpu.memory_space<vmem>>, vector<1x8x128xf32>
    %124 = vector.shape_cast %123 : vector<1x8x128xf32> to vector<8x128xf32>
    %125 = vector.shape_cast %121 : vector<8x128xf32> to vector<1x8x128xf32>
    tpu.vector_store %arg5[%122, %c0_34, %c0_35], %125 {strides = array<i32>} : memref<4x8x128xf32, #tpu.memory_space<vmem>>, vector<1x8x128xf32>,
    %c3_i32 = arith.constant 3 : i32
    %126 = arith.index_cast %c3_i32 : i32 to index
    %c0_36 = arith.constant 0 : index
    %c0_37 = arith.constant 0 : index
    %c0_38 = arith.constant 0 : index
    %127 = vector.load %arg2[%126, %c0_36, %c0_37, %c0_38] : memref<4x4x8x128xf32, #tpu.memory_space<vmem>>, vector<1x4x8x128xf32>
    %128 = vector.shape_cast %127 : vector<1x4x8x128xf32> to vector<4x8x128xf32>
    %129 = vector.extract_strided_slice %128 {offsets = [0, 0, 0], sizes = [1, 8, 128], strides = [1, 1, 1]} : vector<4x8x128xf32> to vector<1x8x128xf32>
    %130 = vector.shape_cast %129 : vector<1x8x128xf32> to vector<8x128xf32>
    %131 = vector.extract_strided_slice %128 {offsets = [1, 0, 0], sizes = [1, 8, 128], strides = [1, 1, 1]} : vector<4x8x128xf32> to vector<1x8x128xf32>
    %132 = vector.shape_cast %131 : vector<1x8x128xf32> to vector<8x128xf32>
    %133 = vector.extract_strided_slice %128 {offsets = [2, 0, 0], sizes = [1, 8, 128], strides = [1, 1, 1]} : vector<4x8x128xf32> to vector<1x8x128xf32>
    %134 = vector.shape_cast %133 : vector<1x8x128xf32> to vector<8x128xf32>
    %135 = vector.extract_strided_slice %128 {offsets = [3, 0, 0], sizes = [1, 8, 128], strides = [1, 1, 1]} : vector<4x8x128xf32> to vector<1x8x128xf32>
    %136 = vector.shape_cast %135 : vector<1x8x128xf32> to vector<8x128xf32>
    %137 = arith.mulf %136, %121 : vector<8x128xf32>
    %cst_39 = arith.constant dense<0.000000e+00> : vector<8x256xf32>
    %138 = tpu.matmul %137, %3, %cst_39 {dimension_numbers = #tpu.dot_dimension_numbers<[1], [0], [0], [1], [0, 0, 1, 1], [], []>} : vector<8x128xf32>, vector<128x256xf32>, vector<8x256xf32> -> vector<8x256xf32>
    %139 = vector.extract_strided_slice %138 {offsets = [0, 0], sizes = [8, 128], strides = [1, 1]} : vector<8x256xf32> to vector<8x128xf32>
    %140 = arith.addf %130, %139 : vector<8x128xf32>
    %141 = arith.negf %140 : vector<8x128xf32>
    %142 = math.exp %141 : vector<8x128xf32>
    %cst_40 = arith.constant 1.000000e+00 : f32
    %143 = vector.broadcast %cst_40 : f32 to vector<8x128xf32>
    %144 = arith.addf %143, %142 : vector<8x128xf32>
    %145 = arith.divf %143, %144 : vector<8x128xf32>
    %146 = vector.extract_strided_slice %138 {offsets = [0, 128], sizes = [8, 128], strides = [1, 1]} : vector<8x256xf32> to vector<8x128xf32>
    %147 = arith.addf %132, %146 : vector<8x128xf32>
    %148 = arith.negf %147 : vector<8x128xf32>
    %149 = math.exp %148 : vector<8x128xf32>
    %cst_41 = arith.constant 1.000000e+00 : f32
    %150 = vector.broadcast %cst_41 : f32 to vector<8x128xf32>
    %151 = arith.addf %150, %149 : vector<8x128xf32>
    %152 = arith.divf %150, %151 : vector<8x128xf32>
    %153 = arith.mulf %152, %137 : vector<8x128xf32>
    %cst_42 = arith.constant dense<0.000000e+00> : vector<8x128xf32>
    %154 = tpu.matmul %153, %4, %cst_42 {dimension_numbers = #tpu.dot_dimension_numbers<[1], [0], [0], [1], [0, 0, 1, 1], [], []>} : vector<8x128xf32>, vector<128x128xf32>, vector<8x128xf32> -> vector<8x128xf32>
    %155 = arith.addf %134, %154 : vector<8x128xf32>
    %156 = math.tanh %155 : vector<8x128xf32>
    %cst_43 = arith.constant 1.000000e+00 : f32
    %157 = vector.broadcast %cst_43 : f32 to vector<8x128xf32>
    %158 = arith.subf %157, %145 : vector<8x128xf32>
    %159 = arith.mulf %158, %137 : vector<8x128xf32>
    %160 = arith.mulf %145, %156 : vector<8x128xf32>
    %161 = arith.addf %159, %160 : vector<8x128xf32>
    %162 = arith.index_cast %c3_i32 : i32 to index
    %c0_44 = arith.constant 0 : index
    %c0_45 = arith.constant 0 : index
    %163 = vector.load %arg5[%162, %c0_44, %c0_45] : memref<4x8x128xf32, #tpu.memory_space<vmem>>, vector<1x8x128xf32>
    %164 = vector.shape_cast %163 : vector<1x8x128xf32> to vector<8x128xf32>
    %165 = vector.shape_cast %161 : vector<8x128xf32> to vector<1x8x128xf32>
    tpu.vector_store %arg5[%162, %c0_44, %c0_45], %165 {strides = array<i32>} : memref<4x8x128xf32, #tpu.memory_space<vmem>>, vector<1x8x128xf32>,
    %c4_i32 = arith.constant 4 : i32
    %c0_46 = arith.constant 0 : index
    %c0_47 = arith.constant 0 : index
    %166 = vector.load %arg6[%c0_46, %c0_47] : memref<8x128xf32, #tpu.memory_space<vmem>>, vector<8x128xf32>
    tpu.vector_store %arg6[%c0_46, %c0_47], %161 {strides = array<i32>} : memref<8x128xf32, #tpu.memory_space<vmem>>, vector<8x128xf32>,
    return
  }
  func.func @transform_0(%arg0: i32, %arg1: i32) -> (i32, i32, i32, i32) {
    %c0_i32 = arith.constant 0 : i32
    %c0_i32_0 = arith.constant 0 : i32
    %c0_i32_1 = arith.constant 0 : i32
    return %arg1, %c0_i32, %arg0, %c0_i32_0 : i32, i32, i32, i32
  }
  func.func @transform_1(%arg0: i32, %arg1: i32) -> (i32, i32) {
    %c0_i32 = arith.constant 0 : i32
    %c0_i32_0 = arith.constant 0 : i32
    %c0_i32_1 = arith.constant 0 : i32
    return %c0_i32, %c0_i32_0 : i32, i32
  }
  func.func @transform_2(%arg0: i32, %arg1: i32) -> (i32, i32) {
    %c0_i32 = arith.constant 0 : i32
    %c0_i32_0 = arith.constant 0 : i32
    %c0_i32_1 = arith.constant 0 : i32
    return %c0_i32, %c0_i32_0 : i32, i32
  }
  func.func @transform_3(%arg0: i32, %arg1: i32) -> (i32, i32, i32) {
    %c0_i32 = arith.constant 0 : i32
    %c0_i32_0 = arith.constant 0 : i32
    return %arg1, %arg0, %c0_i32 : i32, i32, i32
  }
}

</mosaic_0001>

<llo_original>
// kernel: grud_forward.1
$region0: #{grud_forward.1}
  #allocation0 [shape = 'u32[]', space=smem, size = 0x4, offset = 0x4, fixed_abs, tag = 'smem constant byte address 0x4 - core index']
  #allocation1 [shape = 'u32[144,128]{1,0:T(1,128)}', space=vmem, size = 0x12000, scoped, tag = 'internal scratch']
  #allocation2 [shape = 'f32[8,128]{1,0:T(8,128)}', space=vmem, size = 0x1000, scoped, tag = 'scratch operand']
  %s0 = inlined_call_operand.hbm [shape: f32[8,4,8,128], index: 0, kind: input, shape index: {}]
  %s1 = inlined_call_operand.hbm [shape: f32[128,256], index: 1, kind: input, shape index: {}]
  %s2 = inlined_call_operand.hbm [shape: f32[128,128], index: 2, kind: input, shape index: {}]
  %s3 = inlined_call_operand.hbm [shape: f32[8,8,128], index: 3, kind: output, shape index: {}]
  %s4 = sld [smem:[#allocation0]]
  $region61: #{grud_forward.1} parent=0
    _
  %s6 = ssub.s32 1, %s4
  %s7 = scalar_select 0, %s6, %s4
  $region1: #{grud_forward.1} parent=0
    #allocation3 [shape = 'u8[131072]{0}', space=vmem, size = 0x20000, scoped, tag = 'input window, operand 0']
    #allocation4 [shape = 's32[2]{0}', space=sflag, size = 0x8, scoped, tag = 'scoped memory for grud_forward.1']
    #allocation5 [shape = 's32[2]{0}', space=sflag, size = 0x8, scoped, tag = 'scoped memory for grud_forward.1']
    #allocation6 [shape = 'u8[131072]{0}', space=vmem, size = 0x20000, scoped, tag = 'input window, operand 1, single buffered']
    #allocation7 [shape = 's32[1]{0}', space=sflag, size = 0x4, scoped, tag = 'scoped memory for grud_forward.1']
    #allocation8 [shape = 'u8[65536]{0}', space=vmem, size = 0x10000, scoped, tag = 'input window, operand 2, single buffered']
    #allocation9 [shape = 'u8[32768]{0}', space=vmem, size = 0x8000, scoped, tag = 'output window, operand 0']
    %8 = vsyncpa [#allocation4], 0
    %s9 = scalar_lea.sflag [#allocation4], 1
    %10 = vsyncpa %s9, 0
    %11 = vsyncpa [#allocation7], 0
    %12 = vsyncpa [#allocation5], 0
    %s13 = scalar_lea.sflag [#allocation5], 1
    %14 = vsyncpa %s13, 0
    loop: start=0, step=1, limit=4
    $region2: #{grud_forward.1} parent=1 // loop_pre_header
      _
    $region3: #{grud_forward.1} parent=1 // loop_header
      %s16 = sphi 0, %s20
      %p17 = scmp.ge.s32.totalorder %s16, 4
      %s23 = sphi 0, %s35
      %s24 = sphi 0, %s31
      %s25 = sphi 0, %s23
      %s26 = sphi 0, %s24
      %s27 = sphi 0, %s25
      %s28 = sphi 0, %s26
      %s40 = sphi 0, %s42
      %s43 = sphi 0, %s40
      %s44 = sphi 0, %s43
      %s60 = sphi 0, %s44
      %s64 = sphi 0, %s64
      %s66 = sphi 0, %s64
      %s67 = sphi 0, %s66
      %s81 = sphi 0, %s67
      %s85 = sphi 0, %s85
      %s87 = sphi 0, %s85
      %s88 = sphi 0, %s87
      %s102 = sphi 0, %s88
      %s110 = sphi 0, %s112
      %s113 = sphi 0, %s110
      %s114 = sphi 0, %s113
      %s130 = sphi 0, %s114
    $region4: #{grud_forward.1} parent=1 // loop_header_branch
      %19 = sbr.rel (%p17) target = $region8
    $region5: #{grud_forward.1} parent=1 // loop_body
      %s21 = ssub.s32 %s16, 1
      %s22 = ssub.s32 %s16, 2
      %s29 = sadd.s32 1, %s24
      %p30 = scmp.ge.s32.totalorder %s29, 2
      %s31 = scalar_select %p30, 0, %s29
      %s32 = sadd.s32 1, %s23
      %s33 = scalar_select %p30, %s32, %s23
      %p34 = scmp.ge.s32.totalorder %s33, 1
      %s35 = scalar_select %p34, 0, %s33
      %s36 = ssub.s32 %s24, %s31
      %s37 = ssub.s32 %s23, %s35
      %s38 = sor.u32 %s36, %s37
      %p39 = scmp.eq.s32.totalorder %s38, 0
      %s41 = sadd.s32 %s40, 1
      %s42 = scalar_select %p39, %s40, %s41
      %p45 = pneg %p39
      %p46 = scmp.eq.s32.totalorder %s16, 1
      %p47 = por %p45, %p46
      %p48 = scmp.ne.s32.totalorder %s40, %s43
      %p49 = scmp.eq.s32.totalorder %s16, 0
      %p50 = por %p48, %p49
      %p51 = scmp.ne.s32.totalorder %s40, %s43
      %p52 = scmp.eq.s32.totalorder %s21, 1
      %p53 = por %p51, %p52
      %p54 = scmp.ne.s32.totalorder %s43, %s44
      %p55 = scmp.eq.s32.totalorder %s21, 0
      %p56 = por %p54, %p55
      %p57 = scmp.ne.s32.totalorder %s43, %s44
      %p58 = scmp.eq.s32.totalorder %s22, 1
      %p59 = por %p57, %p58
      %p61 = scmp.ne.s32.totalorder %s44, %s60
      %p62 = scmp.eq.s32.totalorder %s22, 0
      %p63 = por %p61, %p62
      %s65 = sadd.s32 %s64, 1
      %p68 = scmp.eq.s32.totalorder %s16, 1
      %p69 = scmp.ne.s32.totalorder %s64, %s66
      %p70 = scmp.eq.s32.totalorder %s16, 0
      %p71 = por %p69, %p70
      %p72 = scmp.ne.s32.totalorder %s64, %s66
      %p73 = scmp.eq.s32.totalorder %s21, 1
      %p74 = por %p72, %p73
      %p75 = scmp.ne.s32.totalorder %s66, %s67
      %p76 = scmp.eq.s32.totalorder %s21, 0
      %p77 = por %p75, %p76
      %p78 = scmp.ne.s32.totalorder %s66, %s67
      %p79 = scmp.eq.s32.totalorder %s22, 1
      %p80 = por %p78, %p79
      %p82 = scmp.ne.s32.totalorder %s67, %s81
      %p83 = scmp.eq.s32.totalorder %s22, 0
      %p84 = por %p82, %p83
      %s86 = sadd.s32 %s85, 1
      %p89 = scmp.eq.s32.totalorder %s16, 1
      %p90 = scmp.ne.s32.totalorder %s85, %s87
      %p91 = scmp.eq.s32.totalorder %s16, 0
      %p92 = por %p90, %p91
      %p93 = scmp.ne.s32.totalorder %s85, %s87
      %p94 = scmp.eq.s32.totalorder %s21, 1
      %p95 = por %p93, %p94
      %p96 = scmp.ne.s32.totalorder %s87, %s88
      %p97 = scmp.eq.s32.totalorder %s21, 0
      %p98 = por %p96, %p97
      %p99 = scmp.ne.s32.totalorder %s87, %s88
      %p100 = scmp.eq.s32.totalorder %s22, 1
      %p101 = por %p99, %p100
      %p103 = scmp.ne.s32.totalorder %s88, %s102
      %p104 = scmp.eq.s32.totalorder %s22, 0
      %p105 = por %p103, %p104
      %s106 = ssub.s32 %s24, %s31
      %s107 = ssub.s32 %s23, %s35
      %s108 = sor.u32 %s106, %s107
      %p109 = scmp.eq.s32.totalorder %s108, 0
      %s111 = sadd.s32 %s110, 1
      %s112 = scalar_select %p109, %s110, %s111
      %p115 = pneg %p109
      %p116 = scmp.eq.s32.totalorder %s16, 1
      %p117 = por %p115, %p116
      %p118 = scmp.ne.s32.totalorder %s110, %s113
      %p119 = scmp.eq.s32.totalorder %s16, 0
      %p120 = por %p118, %p119
      %p121 = scmp.ne.s32.totalorder %s110, %s113
      %p122 = scmp.eq.s32.totalorder %s21, 1
      %p123 = por %p121, %p122
      %p124 = scmp.ne.s32.totalorder %s113, %s114
      %p125 = scmp.eq.s32.totalorder %s21, 0
      %p126 = por %p124, %p125
      %p127 = scmp.ne.s32.totalorder %s113, %s114
      %p128 = scmp.eq.s32.totalorder %s22, 1
      %p129 = por %p127, %p128
      %p131 = scmp.ne.s32.totalorder %s114, %s130
      %p132 = scmp.eq.s32.totalorder %s22, 0
      %p133 = por %p131, %p132
      %p134 = scmp.le.s32.totalorder 1, %s16
      %p135 = scmp.lt.s32.totalorder %s16, 3
      %p136 = pnand %p134, %p135
      %p137 = pneg %p136
      // Predicated region
      $region9: #{grud_forward.1} parent=5 // pred_check
        _
      $region10: #{grud_forward.1} parent=5 // pred_check_branch
        %139 = sbr.rel (%p136) target = $region12
      $region11: #{grud_forward.1} parent=5 // pred_region
        %s140 = ssub.s32 %s16, 1
        // Predicated region
        $region13: #{grud_forward.1} parent=11 // pred_check
          %p141 = pneg %p77
        $region14: #{grud_forward.1} parent=11 // pred_check_branch
          %143 = sbr.rel (%p141) target = $region16
        $region15: #{grud_forward.1} parent=11 // pred_region
          %s145 = ssub.s32 4096, 4096
          %146 = vsyncadd [#allocation7], %s145
          %s147 = sshll.u32 [#allocation6], 4
          %s148 = int_to_ptr.vmem [resolvable:$true] %s147
          %153 = dma.hbm_to_vmem [thread:$0]  %s1, 4096, %s148, [#allocation7], 256, 256, 16
        $region16: #{grud_forward.1} parent=11 // pred_fallthru
          _
        // Predicated region
        $region17: #{grud_forward.1} parent=11 // pred_check
          %p154 = pneg %p98
        $region18: #{grud_forward.1} parent=11 // pred_check_branch
          %156 = sbr.rel (%p154) target = $region20
        $region19: #{grud_forward.1} parent=11 // pred_region
          %s158 = ssub.s32 2048, 2048
          %159 = vsyncadd [#allocation7], %s158
          %s160 = sshll.u32 [#allocation8], 4
          %s161 = int_to_ptr.vmem [resolvable:$true] %s160
          %166 = dma.hbm_to_vmem [thread:$0]  %s2, 2048, %s161, [#allocation7], 128, 128, 8
        $region20: #{grud_forward.1} parent=11 // pred_fallthru
          _
      $region12: #{grud_forward.1} parent=5 // pred_fallthru
        _
      %p167 = scmp.lt.s32.totalorder %s16, 2
      // Predicated region
      $region21: #{grud_forward.1} parent=5 // pred_check
        %p168 = pneg %p167
      $region22: #{grud_forward.1} parent=5 // pred_check_branch
        %170 = sbr.rel (%p168) target = $region24
      $region23: #{grud_forward.1} parent=5 // pred_region
        // Predicated region
        $region25: #{grud_forward.1} parent=23 // pred_check
          %p171 = pneg %p50
        $region26: #{grud_forward.1} parent=23 // pred_check_branch
          %173 = sbr.rel (%p171) target = $region28
        $region27: #{grud_forward.1} parent=23 // pred_region
          %s174 = sand.u32 %s40, 1
          %s175 = scalar_lea.sflag [#allocation4], %s174
          %s176 = sand.u32 %s40, 1
          %s177 = smul.addr %s176, 128
          %s178 = scalar_lea.vmem [#allocation3], %s177
          %s179 = smul.u32 4, %s24
          %s181 = ssub.s32 2048, 2048
          %182 = vsyncadd %s175, %s181
          %s183 = smul.addr %s179, 4
          %s184 = sadd.s32 %s23, %s183
          %s185 = smul.addr %s184, 128
          %s186 = scalar_lea.hbm %s0, %s185
          %s187 = sshll.u32 %s178, 4
          %s188 = int_to_ptr.vmem [resolvable:$true] %s187
          %193 = dma.hbm_to_vmem [thread:$0]  %s186, 2048, %s188, %s175, 128, 128, 8
        $region28: #{grud_forward.1} parent=23 // pred_fallthru
          _
      $region24: #{grud_forward.1} parent=5 // pred_fallthru
        _
      %p194 = scmp.le.s32.totalorder 1, %s16
      %p195 = scmp.lt.s32.totalorder %s16, 3
      %p196 = pnand %p194, %p195
      %p197 = pneg %p196
      // Predicated region
      $region29: #{grud_forward.1} parent=5 // pred_check
        _
      $region30: #{grud_forward.1} parent=5 // pred_check_branch
        %199 = sbr.rel (%p196) target = $region32
      $region31: #{grud_forward.1} parent=5 // pred_region
        %s200 = ssub.s32 %s16, 1
        %s201 = sand.u32 %s43, 1
        %s202 = scalar_lea.sflag [#allocation4], %s201
        %s203 = sand.u32 %s43, 1
        %s204 = smul.addr %s203, 128
        %s205 = scalar_lea.vmem [#allocation3], %s204
        // Predicated region
        $region33: #{grud_forward.1} parent=31 // pred_check
          %p206 = pneg %p56
        $region34: #{grud_forward.1} parent=31 // pred_check_branch
          %208 = sbr.rel (%p206) target = $region36
        $region35: #{grud_forward.1} parent=31 // pred_region
          %209 = dma.done %s202, 2048
        $region36: #{grud_forward.1} parent=31 // pred_fallthru
          _
        // Predicated region
        $region37: #{grud_forward.1} parent=31 // pred_check
          %p210 = pneg %p77
        $region38: #{grud_forward.1} parent=31 // pred_check_branch
          %212 = sbr.rel (%p210) target = $region40
        $region39: #{grud_forward.1} parent=31 // pred_region
          %213 = dma.done [#allocation7], 4096
        $region40: #{grud_forward.1} parent=31 // pred_fallthru
          _
        // Predicated region
        $region41: #{grud_forward.1} parent=31 // pred_check
          %p214 = pneg %p98
        $region42: #{grud_forward.1} parent=31 // pred_check_branch
          %216 = sbr.rel (%p214) target = $region44
        $region43: #{grud_forward.1} parent=31 // pred_region
          %217 = dma.done [#allocation7], 2048
        $region44: #{grud_forward.1} parent=31 // pred_fallthru
          _
        %s218 = sand.u32 %s43, 1
        %s219 = scalar_lea.sflag [#allocation4], %s218
        %s220 = sand.u32 %s43, 1
        %s221 = smul.addr %s220, 128
        %s222 = scalar_lea.vmem [#allocation3], %s221
        %p223 = pneg %p56
        %p224 = pneg %p53
        %p225 = pneg %p77
        %p226 = pneg %p74
        %p227 = pneg %p98
        %p228 = pneg %p95
        %p229 = pneg %p126
        %p230 = pneg %p123
        %s231 = sand.u32 %s113, 1
        %s232 = scalar_lea.sflag [#allocation5], %s231
        %s233 = sand.u32 %s113, 1
        %s234 = smul.addr %s233, 32
        %s235 = scalar_lea.vmem [#allocation9], %s234
        %s236 = smul.u32 4, %s26
        %s237 = smul.u32 4, %s26
        %p238 = scmp.eq.s32.totalorder %s26, 0
        // Predicated region
        $region45: #{grud_forward.1} parent=31 // pred_check
          %p239 = pneg %p238
        $region46: #{grud_forward.1} parent=31 // pred_check_branch
          %241 = sbr.rel (%p239) target = $region48
        $region47: #{grud_forward.1} parent=31 // pred_region
          %242 = vst [vmem:[#allocation2] sm:$0xff] 0.0
        $region48: #{grud_forward.1} parent=31 // pred_fallthru
          _
        %v243 = vld [vmem:[#allocation6] sm:$0xff]
        %v244 = vld [vmem:[#allocation6 + $0x8] sm:$0xff]
        %v245 = vld [vmem:[#allocation6 + $0x10] sm:$0xff]
        %v246 = vld [vmem:[#allocation6 + $0x18] sm:$0xff]
        %v247 = vld [vmem:[#allocation6 + $0x20] sm:$0xff]
        %v248 = vld [vmem:[#allocation6 + $0x28] sm:$0xff]
        %v249 = vld [vmem:[#allocation6 + $0x30] sm:$0xff]
        %v250 = vld [vmem:[#allocation6 + $0x38] sm:$0xff]
        %v251 = vld [vmem:[#allocation6 + $0x40] sm:$0xff]
        %v252 = vld [vmem:[#allocation6 + $0x48] sm:$0xff]
        %v253 = vld [vmem:[#allocation6 + $0x50] sm:$0xff]
        %v254 = vld [vmem:[#allocation6 + $0x58] sm:$0xff]
        %v255 = vld [vmem:[#allocation6 + $0x60] sm:$0xff]
        %v256 = vld [vmem:[#allocation6 + $0x68] sm:$0xff]
        %v257 = vld [vmem:[#allocation6 + $0x70] sm:$0xff]
        %v258 = vld [vmem:[#allocation6 + $0x78] sm:$0xff]
        %v259 = vld [vmem:[#allocation6 + $0x80] sm:$0xff]
        %v260 = vld [vmem:[#allocation6 + $0x88] sm:$0xff]
        %v261 = vld [vmem:[#allocation6 + $0x90] sm:$0xff]
        %v262 = vld [vmem:[#allocation6 + $0x98] sm:$0xff]
        %v263 = vld [vmem:[#allocation6 + $0xa0] sm:$0xff]
        %v264 = vld [vmem:[#allocation6 + $0xa8] sm:$0xff]
        %v265 = vld [vmem:[#allocation6 + $0xb0] sm:$0xff]
        %v266 = vld [vmem:[#allocation6 + $0xb8] sm:$0xff]
        %v267 = vld [vmem:[#allocation6 + $0xc0] sm:$0xff]
        %v268 = vld [vmem:[#allocation6 + $0xc8] sm:$0xff]
        %v269 = vld [vmem:[#allocation6 + $0xd0] sm:$0xff]
        %v270 = vld [vmem:[#allocation6 + $0xd8] sm:$0xff]
        %v271 = vld [vmem:[#allocation6 + $0xe0] sm:$0xff]
        %v272 = vld [vmem:[#allocation6 + $0xe8] sm:$0xff]
        %v273 = vld [vmem:[#allocation6 + $0xf0] sm:$0xff]
        %v274 = vld [vmem:[#allocation6 + $0xf8] sm:$0xff]
        %v275 = vld [vmem:[#allocation8] sm:$0xff]
        %v276 = vld [vmem:[#allocation8 + $0x8] sm:$0xff]
        %v277 = vld [vmem:[#allocation8 + $0x10] sm:$0xff]
        %v278 = vld [vmem:[#allocation8 + $0x18] sm:$0xff]
        %v279 = vld [vmem:[#allocation8 + $0x20] sm:$0xff]
        %v280 = vld [vmem:[#allocation8 + $0x28] sm:$0xff]
        %v281 = vld [vmem:[#allocation8 + $0x30] sm:$0xff]
        %v282 = vld [vmem:[#allocation8 + $0x38] sm:$0xff]
        %v283 = vld [vmem:[#allocation8 + $0x40] sm:$0xff]
        %v284 = vld [vmem:[#allocation8 + $0x48] sm:$0xff]
        %v285 = vld [vmem:[#allocation8 + $0x50] sm:$0xff]
        %v286 = vld [vmem:[#allocation8 + $0x58] sm:$0xff]
        %v287 = vld [vmem:[#allocation8 + $0x60] sm:$0xff]
        %v288 = vld [vmem:[#allocation8 + $0x68] sm:$0xff]
        %v289 = vld [vmem:[#allocation8 + $0x70] sm:$0xff]
        %v290 = vld [vmem:[#allocation8 + $0x78] sm:$0xff]
        %v291 = vld [vmem:[#allocation2] sm:$0xff]
        %v292 = vld [vmem:[%s205] sm:$0xff]
        %v293 = vld [vmem:[%s205 + $0x8] sm:$0xff]
        %v294 = vld [vmem:[%s205 + $0x10] sm:$0xff]
        %v295 = vld [vmem:[%s205 + $0x18] sm:$0xff]
        %v296 = vmul.f32 %v295, %v291
        %297 = vmatprep.subr.mxu0 %v244
        %298 = vmatpush1.msra.mxu0 %v243
        %299 = vmatprep.subr.mxu0 %v246
        %300 = vmatpush1.msra.mxu0 %v245
        %301 = vmatprep.subr.mxu0 %v248
        %302 = vmatpush1.msra.mxu0 %v247
        %303 = vmatprep.subr.mxu0 %v250
        %304 = vmatpush1.msra.mxu0 %v249
        %305 = vmatprep.subr.mxu0 %v252
        %306 = vmatpush1.msra.mxu0 %v251
        %307 = vmatprep.subr.mxu0 %v254
        %308 = vmatpush1.msra.mxu0 %v253
        %309 = vmatprep.subr.mxu0 %v256
        %310 = vmatpush1.msra.mxu0 %v255
        %311 = vmatprep.subr.mxu0 %v258
        %312 = vmatpush1.msra.mxu0 %v257
        %313 = vmatprep.subr.mxu0 %v260
        %314 = vmatpush1.msra.mxu0 %v259
        %315 = vmatprep.subr.mxu0 %v262
        %316 = vmatpush1.msra.mxu0 %v261
        %317 = vmatprep.subr.mxu0 %v264
        %318 = vmatpush1.msra.mxu0 %v263
        %319 = vmatprep.subr.mxu0 %v266
        %320 = vmatpush1.msra.mxu0 %v265
        %321 = vmatprep.subr.mxu0 %v268
        %322 = vmatpush1.msra.mxu0 %v267
        %323 = vmatprep.subr.mxu0 %v270
        %324 = vmatpush1.msra.mxu0 %v269
        %325 = vmatprep.subr.mxu0 %v272
        %326 = vmatpush1.msra.mxu0 %v271
        %327 = vmatprep.subr.mxu0 %v274
        %328 = vmatpush1.msra.mxu0 %v273
        %329 = vmatprep.subr.mxu0 0.0
        %330 = vmatpush1.msra.mxu0 0.0
        %331 = vmatprep.subr.mxu0 0.0
        %332 = vmatpush1.msra.mxu0 0.0
        %333 = vmatprep.subr.mxu0 0.0
        %334 = vmatpush1.msra.mxu0 0.0
        %335 = vmatprep.subr.mxu0 0.0
        %336 = vmatpush1.msra.mxu0 0.0
        %337 = vmatprep.subr.mxu0 0.0
        %338 = vmatpush1.msra.mxu0 0.0
        %339 = vmatprep.subr.mxu0 0.0
        %340 = vmatpush1.msra.mxu0 0.0
        %341 = vmatprep.subr.mxu0 0.0
        %342 = vmatpush1.msra.mxu0 0.0
        %343 = vmatprep.subr.mxu0 0.0
        %344 = vmatpush1.msra.mxu0 0.0
        %345 = vmatprep.subr.mxu0 0.0
        %346 = vmatpush1.msra.mxu0 0.0
        %347 = vmatprep.subr.mxu0 0.0
        %348 = vmatpush1.msra.mxu0 0.0
        %349 = vmatprep.subr.mxu0 0.0
        %350 = vmatpush1.msra.mxu0 0.0
        %351 = vmatprep.subr.mxu0 0.0
        %352 = vmatpush1.msra.mxu0 0.0
        %353 = vmatprep.subr.mxu0 0.0
        %354 = vmatpush1.msra.mxu0 0.0
        %355 = vmatprep.subr.mxu0 0.0
        %356 = vmatpush1.msra.mxu0 0.0
        %357 = vmatprep.subr.mxu0 0.0
        %358 = vmatpush1.msra.mxu0 0.0
        %359 = vmatprep.subr.mxu0 0.0
        %360 = vmatpush1.msra.mxu0 0.0
        %361 = vmatprep.mubr.f32.mxu0 0.0
        %362 = vmatmul.mubr.f32.gmra.mrb[0].mxu0 %v296
        %v363 = vpop.f32.mrb[0].mxu0
        %v364 = vadd.f32 0.0, %v363
        %v365 = vpop.f32.mrb[0].mxu0
        %v366 = vadd.f32 0.0, %v365
        %367 = vdwg.mxu0
        %v368 = vadd.f32 %v292, %v364
        %v369 = vxor.u32 %v368, 2147483648
        %v370 = vmul.f32 %v369, 1.442695
        %v371 = vpow.pop %v370
        %v372 = vadd.f32 %v371, 1.0
        %v373 = vrcp.pop %v372
        %v374 = vmul.f32 1.0, %v373
        %v375 = vadd.f32 %v293, %v366
        %v376 = vxor.u32 %v375, 2147483648
        %v377 = vmul.f32 %v376, 1.442695
        %v378 = vpow.pop %v377
        %v379 = vadd.f32 %v378, 1.0
        %v380 = vrcp.pop %v379
        %v381 = vmul.f32 1.0, %v380
        %v382 = vmul.f32 %v381, %v296
        %383 = vmatprep.subr.mxu0 0.0
        %384 = vmatpush1.msra.mxu0 %v275
        %385 = vmatprep.subr.mxu0 0.0
        %386 = vmatpush1.msra.mxu0 %v276
        %387 = vmatprep.subr.mxu0 0.0
        %388 = vmatpush1.msra.mxu0 %v277
        %389 = vmatprep.subr.mxu0 0.0
        %390 = vmatpush1.msra.mxu0 %v278
        %391 = vmatprep.subr.mxu0 0.0
        %392 = vmatpush1.msra.mxu0 %v279
        %393 = vmatprep.subr.mxu0 0.0
        %394 = vmatpush1.msra.mxu0 %v280
        %395 = vmatprep.subr.mxu0 0.0
        %396 = vmatpush1.msra.mxu0 %v281
        %397 = vmatprep.subr.mxu0 0.0
        %398 = vmatpush1.msra.mxu0 %v282
        %399 = vmatprep.subr.mxu0 0.0
        %400 = vmatpush1.msra.mxu0 %v283
        %401 = vmatprep.subr.mxu0 0.0
        %402 = vmatpush1.msra.mxu0 %v284
        %403 = vmatprep.subr.mxu0 0.0
        %404 = vmatpush1.msra.mxu0 %v285
        %405 = vmatprep.subr.mxu0 0.0
        %406 = vmatpush1.msra.mxu0 %v286
        %407 = vmatprep.subr.mxu0 0.0
        %408 = vmatpush1.msra.mxu0 %v287
        %409 = vmatprep.subr.mxu0 0.0
        %410 = vmatpush1.msra.mxu0 %v288
        %411 = vmatprep.subr.mxu0 0.0
        %412 = vmatpush1.msra.mxu0 %v289
        %413 = vmatprep.subr.mxu0 0.0
        %414 = vmatpush1.msra.mxu0 %v290
        %415 = vmatprep.subr.mxu0 0.0
        %416 = vmatpush1.msra.mxu0 0.0
        %417 = vmatprep.subr.mxu0 0.0
        %418 = vmatpush1.msra.mxu0 0.0
        %419 = vmatprep.subr.mxu0 0.0
        %420 = vmatpush1.msra.mxu0 0.0
        %421 = vmatprep.subr.mxu0 0.0
        %422 = vmatpush1.msra.mxu0 0.0
        %423 = vmatprep.subr.mxu0 0.0
        %424 = vmatpush1.msra.mxu0 0.0
        %425 = vmatprep.subr.mxu0 0.0
        %426 = vmatpush1.msra.mxu0 0.0
        %427 = vmatprep.subr.mxu0 0.0
        %428 = vmatpush1.msra.mxu0 0.0
        %429 = vmatprep.subr.mxu0 0.0
        %430 = vmatpush1.msra.mxu0 0.0
        %431 = vmatprep.subr.mxu0 0.0
        %432 = vmatpush1.msra.mxu0 0.0
        %433 = vmatprep.subr.mxu0 0.0
        %434 = vmatpush1.msra.mxu0 0.0
        %435 = vmatprep.subr.mxu0 0.0
        %436 = vmatpush1.msra.mxu0 0.0
        %437 = vmatprep.subr.mxu0 0.0
        %438 = vmatpush1.msra.mxu0 0.0
        %439 = vmatprep.subr.mxu0 0.0
        %440 = vmatpush1.msra.mxu0 0.0
        %441 = vmatprep.subr.mxu0 0.0
        %442 = vmatpush1.msra.mxu0 0.0
        %443 = vmatprep.subr.mxu0 0.0
        %444 = vmatpush1.msra.mxu0 0.0
        %445 = vmatprep.subr.mxu0 0.0
        %446 = vmatpush1.msra.mxu0 0.0
        %447 = vmatprep.mubr.f32.mxu0 0.0
        %448 = vmatmul.mubr.f32.gmra.mrb[0].mxu0 %v382
        %v449 = vpop.f32.mrb[0].mxu0
        %v450 = vadd.f32 0.0, %v449
        %v451 = vpop.f32.mrb[0].mxu0
        %452 = vdwg.mxu0
        %v453 = vadd.f32 %v294, %v450
        %v454 = vtanh.pop %v453
        %v455 = vsub.f32 1.0, %v374
        %v456 = vmul.f32 %v455, %v296
        %v457 = vmul.f32 %v374, %v454
        %v458 = vadd.f32 %v456, %v457
        %459 = vst [vmem:[%s235] sm:$0xff] %v458
        %s460 = scalar_lea.vmem %s205, 32 [#allocation3]
        %v461 = vld [vmem:[%s460] sm:$0xff]
        %v462 = vld [vmem:[%s460 + $0x8] sm:$0xff]
        %v463 = vld [vmem:[%s460 + $0x10] sm:$0xff]
        %v464 = vld [vmem:[%s460 + $0x18] sm:$0xff]
        %v465 = vmul.f32 %v464, %v458
        %466 = vmatprep.subr.mxu0 %v244
        %467 = vmatpush1.msra.mxu0 %v243
        %468 = vmatprep.subr.mxu0 %v246
        %469 = vmatpush1.msra.mxu0 %v245
        %470 = vmatprep.subr.mxu0 %v248
        %471 = vmatpush1.msra.mxu0 %v247
        %472 = vmatprep.subr.mxu0 %v250
        %473 = vmatpush1.msra.mxu0 %v249
        %474 = vmatprep.subr.mxu0 %v252
        %475 = vmatpush1.msra.mxu0 %v251
        %476 = vmatprep.subr.mxu0 %v254
        %477 = vmatpush1.msra.mxu0 %v253
        %478 = vmatprep.subr.mxu0 %v256
        %479 = vmatpush1.msra.mxu0 %v255
        %480 = vmatprep.subr.mxu0 %v258
        %481 = vmatpush1.msra.mxu0 %v257
        %482 = vmatprep.subr.mxu0 %v260
        %483 = vmatpush1.msra.mxu0 %v259
        %484 = vmatprep.subr.mxu0 %v262
        %485 = vmatpush1.msra.mxu0 %v261
        %486 = vmatprep.subr.mxu0 %v264
        %487 = vmatpush1.msra.mxu0 %v263
        %488 = vmatprep.subr.mxu0 %v266
        %489 = vmatpush1.msra.mxu0 %v265
        %490 = vmatprep.subr.mxu0 %v268
        %491 = vmatpush1.msra.mxu0 %v267
        %492 = vmatprep.subr.mxu0 %v270
        %493 = vmatpush1.msra.mxu0 %v269
        %494 = vmatprep.subr.mxu0 %v272
        %495 = vmatpush1.msra.mxu0 %v271
        %496 = vmatprep.subr.mxu0 %v274
        %497 = vmatpush1.msra.mxu0 %v273
        %498 = vmatprep.subr.mxu0 0.0
        %499 = vmatpush1.msra.mxu0 0.0
        %500 = vmatprep.subr.mxu0 0.0
        %501 = vmatpush1.msra.mxu0 0.0
        %502 = vmatprep.subr.mxu0 0.0
        %503 = vmatpush1.msra.mxu0 0.0
        %504 = vmatprep.subr.mxu0 0.0
        %505 = vmatpush1.msra.mxu0 0.0
        %506 = vmatprep.subr.mxu0 0.0
        %507 = vmatpush1.msra.mxu0 0.0
        %508 = vmatprep.subr.mxu0 0.0
        %509 = vmatpush1.msra.mxu0 0.0
        %510 = vmatprep.subr.mxu0 0.0
        %511 = vmatpush1.msra.mxu0 0.0
        %512 = vmatprep.subr.mxu0 0.0
        %513 = vmatpush1.msra.mxu0 0.0
        %514 = vmatprep.subr.mxu0 0.0
        %515 = vmatpush1.msra.mxu0 0.0
        %516 = vmatprep.subr.mxu0 0.0
        %517 = vmatpush1.msra.mxu0 0.0
        %518 = vmatprep.subr.mxu0 0.0
        %519 = vmatpush1.msra.mxu0 0.0
        %520 = vmatprep.subr.mxu0 0.0
        %521 = vmatpush1.msra.mxu0 0.0
        %522 = vmatprep.subr.mxu0 0.0
        %523 = vmatpush1.msra.mxu0 0.0
        %524 = vmatprep.subr.mxu0 0.0
        %525 = vmatpush1.msra.mxu0 0.0
        %526 = vmatprep.subr.mxu0 0.0
        %527 = vmatpush1.msra.mxu0 0.0
        %528 = vmatprep.subr.mxu0 0.0
        %529 = vmatpush1.msra.mxu0 0.0
        %530 = vmatprep.mubr.f32.mxu0 0.0
        %531 = vmatmul.mubr.f32.gmra.mrb[0].mxu0 %v465
        %v532 = vpop.f32.mrb[0].mxu0
        %v533 = vadd.f32 0.0, %v532
        %v534 = vpop.f32.mrb[0].mxu0
        %v535 = vadd.f32 0.0, %v534
        %536 = vdwg.mxu0
        %v537 = vadd.f32 %v461, %v533
        %v538 = vxor.u32 %v537, 2147483648
        %v539 = vmul.f32 %v538, 1.442695
        %v540 = vpow.pop %v539
        %v541 = vadd.f32 %v540, 1.0
        %v542 = vrcp.pop %v541
        %v543 = vmul.f32 1.0, %v542
        %v544 = vadd.f32 %v462, %v535
        %v545 = vxor.u32 %v544, 2147483648
        %v546 = vmul.f32 %v545, 1.442695
        %v547 = vpow.pop %v546
        %v548 = vadd.f32 %v547, 1.0
        %v549 = vrcp.pop %v548
        %v550 = vmul.f32 1.0, %v549
        %v551 = vmul.f32 %v550, %v465
        %552 = vmatprep.subr.mxu0 0.0
        %553 = vmatpush1.msra.mxu0 %v275
        %554 = vmatprep.subr.mxu0 0.0
        %555 = vmatpush1.msra.mxu0 %v276
        %556 = vmatprep.subr.mxu0 0.0
        %557 = vmatpush1.msra.mxu0 %v277
        %558 = vmatprep.subr.mxu0 0.0
        %559 = vmatpush1.msra.mxu0 %v278
        %560 = vmatprep.subr.mxu0 0.0
        %561 = vmatpush1.msra.mxu0 %v279
        %562 = vmatprep.subr.mxu0 0.0
        %563 = vmatpush1.msra.mxu0 %v280
        %564 = vmatprep.subr.mxu0 0.0
        %565 = vmatpush1.msra.mxu0 %v281
        %566 = vmatprep.subr.mxu0 0.0
        %567 = vmatpush1.msra.mxu0 %v282
        %568 = vmatprep.subr.mxu0 0.0
        %569 = vmatpush1.msra.mxu0 %v283
        %570 = vmatprep.subr.mxu0 0.0
        %571 = vmatpush1.msra.mxu0 %v284
        %572 = vmatprep.subr.mxu0 0.0
        %573 = vmatpush1.msra.mxu0 %v285
        %574 = vmatprep.subr.mxu0 0.0
        %575 = vmatpush1.msra.mxu0 %v286
        %576 = vmatprep.subr.mxu0 0.0
        %577 = vmatpush1.msra.mxu0 %v287
        %578 = vmatprep.subr.mxu0 0.0
        %579 = vmatpush1.msra.mxu0 %v288
        %580 = vmatprep.subr.mxu0 0.0
        %581 = vmatpush1.msra.mxu0 %v289
        %582 = vmatprep.subr.mxu0 0.0
        %583 = vmatpush1.msra.mxu0 %v290
        %584 = vmatprep.subr.mxu0 0.0
        %585 = vmatpush1.msra.mxu0 0.0
        %586 = vmatprep.subr.mxu0 0.0
        %587 = vmatpush1.msra.mxu0 0.0
        %588 = vmatprep.subr.mxu0 0.0
        %589 = vmatpush1.msra.mxu0 0.0
        %590 = vmatprep.subr.mxu0 0.0
        %591 = vmatpush1.msra.mxu0 0.0
        %592 = vmatprep.subr.mxu0 0.0
        %593 = vmatpush1.msra.mxu0 0.0
        %594 = vmatprep.subr.mxu0 0.0
        %595 = vmatpush1.msra.mxu0 0.0
        %596 = vmatprep.subr.mxu0 0.0
        %597 = vmatpush1.msra.mxu0 0.0
        %598 = vmatprep.subr.mxu0 0.0
        %599 = vmatpush1.msra.mxu0 0.0
        %600 = vmatprep.subr.mxu0 0.0
        %601 = vmatpush1.msra.mxu0 0.0
        %602 = vmatprep.subr.mxu0 0.0
        %603 = vmatpush1.msra.mxu0 0.0
        %604 = vmatprep.subr.mxu0 0.0
        %605 = vmatpush1.msra.mxu0 0.0
        %606 = vmatprep.subr.mxu0 0.0
        %607 = vmatpush1.msra.mxu0 0.0
        %608 = vmatprep.subr.mxu0 0.0
        %609 = vmatpush1.msra.mxu0 0.0
        %610 = vmatprep.subr.mxu0 0.0
        %611 = vmatpush1.msra.mxu0 0.0
        %612 = vmatprep.subr.mxu0 0.0
        %613 = vmatpush1.msra.mxu0 0.0
        %614 = vmatprep.subr.mxu0 0.0
        %615 = vmatpush1.msra.mxu0 0.0
        %616 = vmatprep.mubr.f32.mxu0 0.0
        %617 = vmatmul.mubr.f32.gmra.mrb[0].mxu0 %v551
        %v618 = vpop.f32.mrb[0].mxu0
        %v619 = vadd.f32 0.0, %v618
        %v620 = vpop.f32.mrb[0].mxu0
        %621 = vdwg.mxu0
        %v622 = vadd.f32 %v463, %v619
        %v623 = vtanh.pop %v622
        %v624 = vsub.f32 1.0, %v543
        %v625 = vmul.f32 %v624, %v465
        %v626 = vmul.f32 %v543, %v623
        %v627 = vadd.f32 %v625, %v626
        %s628 = scalar_lea.vmem %s235, 8 [#allocation9]
        %629 = vst [vmem:[%s628] sm:$0xff] %v627
        %s630 = scalar_lea.vmem %s205, 64 [#allocation3]
        %v631 = vld [vmem:[%s630] sm:$0xff]
        %v632 = vld [vmem:[%s630 + $0x8] sm:$0xff]
        %v633 = vld [vmem:[%s630 + $0x10] sm:$0xff]
        %v634 = vld [vmem:[%s630 + $0x18] sm:$0xff]
        %v635 = vmul.f32 %v634, %v627
        %636 = vmatprep.subr.mxu0 %v244
        %637 = vmatpush1.msra.mxu0 %v243
        %638 = vmatprep.subr.mxu0 %v246
        %639 = vmatpush1.msra.mxu0 %v245
        %640 = vmatprep.subr.mxu0 %v248
        %641 = vmatpush1.msra.mxu0 %v247
        %642 = vmatprep.subr.mxu0 %v250
        %643 = vmatpush1.msra.mxu0 %v249
        %644 = vmatprep.subr.mxu0 %v252
        %645 = vmatpush1.msra.mxu0 %v251
        %646 = vmatprep.subr.mxu0 %v254
        %647 = vmatpush1.msra.mxu0 %v253
        %648 = vmatprep.subr.mxu0 %v256
        %649 = vmatpush1.msra.mxu0 %v255
        %650 = vmatprep.subr.mxu0 %v258
        %651 = vmatpush1.msra.mxu0 %v257
        %652 = vmatprep.subr.mxu0 %v260
        %653 = vmatpush1.msra.mxu0 %v259
        %654 = vmatprep.subr.mxu0 %v262
        %655 = vmatpush1.msra.mxu0 %v261
        %656 = vmatprep.subr.mxu0 %v264
        %657 = vmatpush1.msra.mxu0 %v263
        %658 = vmatprep.subr.mxu0 %v266
        %659 = vmatpush1.msra.mxu0 %v265
        %660 = vmatprep.subr.mxu0 %v268
        %661 = vmatpush1.msra.mxu0 %v267
        %662 = vmatprep.subr.mxu0 %v270
        %663 = vmatpush1.msra.mxu0 %v269
        %664 = vmatprep.subr.mxu0 %v272
        %665 = vmatpush1.msra.mxu0 %v271
        %666 = vmatprep.subr.mxu0 %v274
        %667 = vmatpush1.msra.mxu0 %v273
        %668 = vmatprep.subr.mxu0 0.0
        %669 = vmatpush1.msra.mxu0 0.0
        %670 = vmatprep.subr.mxu0 0.0
        %671 = vmatpush1.msra.mxu0 0.0
        %672 = vmatprep.subr.mxu0 0.0
        %673 = vmatpush1.msra.mxu0 0.0
        %674 = vmatprep.subr.mxu0 0.0
        %675 = vmatpush1.msra.mxu0 0.0
        %676 = vmatprep.subr.mxu0 0.0
        %677 = vmatpush1.msra.mxu0 0.0
        %678 = vmatprep.subr.mxu0 0.0
        %679 = vmatpush1.msra.mxu0 0.0
        %680 = vmatprep.subr.mxu0 0.0
        %681 = vmatpush1.msra.mxu0 0.0
        %682 = vmatprep.subr.mxu0 0.0
        %683 = vmatpush1.msra.mxu0 0.0
        %684 = vmatprep.subr.mxu0 0.0
        %685 = vmatpush1.msra.mxu0 0.0
        %686 = vmatprep.subr.mxu0 0.0
        %687 = vmatpush1.msra.mxu0 0.0
        %688 = vmatprep.subr.mxu0 0.0
        %689 = vmatpush1.msra.mxu0 0.0
        %690 = vmatprep.subr.mxu0 0.0
        %691 = vmatpush1.msra.mxu0 0.0
        %692 = vmatprep.subr.mxu0 0.0
        %693 = vmatpush1.msra.mxu0 0.0
        %694 = vmatprep.subr.mxu0 0.0
        %695 = vmatpush1.msra.mxu0 0.0
        %696 = vmatprep.subr.mxu0 0.0
        %697 = vmatpush1.msra.mxu0 0.0
        %698 = vmatprep.subr.mxu0 0.0
        %699 = vmatpush1.msra.mxu0 0.0
        %700 = vmatprep.mubr.f32.mxu0 0.0
        %701 = vmatmul.mubr.f32.gmra.mrb[0].mxu0 %v635
        %v702 = vpop.f32.mrb[0].mxu0
        %v703 = vadd.f32 0.0, %v702
        %v704 = vpop.f32.mrb[0].mxu0
        %v705 = vadd.f32 0.0, %v704
        %706 = vdwg.mxu0
        %v707 = vadd.f32 %v631, %v703
        %v708 = vxor.u32 %v707, 2147483648
        %v709 = vmul.f32 %v708, 1.442695
        %v710 = vpow.pop %v709
        %v711 = vadd.f32 %v710, 1.0
        %v712 = vrcp.pop %v711
        %v713 = vmul.f32 1.0, %v712
        %v714 = vadd.f32 %v632, %v705
        %v715 = vxor.u32 %v714, 2147483648
        %v716 = vmul.f32 %v715, 1.442695
        %v717 = vpow.pop %v716
        %v718 = vadd.f32 %v717, 1.0
        %v719 = vrcp.pop %v718
        %v720 = vmul.f32 1.0, %v719
        %v721 = vmul.f32 %v720, %v635
        %722 = vmatprep.subr.mxu0 0.0
        %723 = vmatpush1.msra.mxu0 %v275
        %724 = vmatprep.subr.mxu0 0.0
        %725 = vmatpush1.msra.mxu0 %v276
        %726 = vmatprep.subr.mxu0 0.0
        %727 = vmatpush1.msra.mxu0 %v277
        %728 = vmatprep.subr.mxu0 0.0
        %729 = vmatpush1.msra.mxu0 %v278
        %730 = vmatprep.subr.mxu0 0.0
        %731 = vmatpush1.msra.mxu0 %v279
        %732 = vmatprep.subr.mxu0 0.0
        %733 = vmatpush1.msra.mxu0 %v280
        %734 = vmatprep.subr.mxu0 0.0
        %735 = vmatpush1.msra.mxu0 %v281
        %736 = vmatprep.subr.mxu0 0.0
        %737 = vmatpush1.msra.mxu0 %v282
        %738 = vmatprep.subr.mxu0 0.0
        %739 = vmatpush1.msra.mxu0 %v283
        %740 = vmatprep.subr.mxu0 0.0
        %741 = vmatpush1.msra.mxu0 %v284
        %742 = vmatprep.subr.mxu0 0.0
        %743 = vmatpush1.msra.mxu0 %v285
        %744 = vmatprep.subr.mxu0 0.0
        %745 = vmatpush1.msra.mxu0 %v286
        %746 = vmatprep.subr.mxu0 0.0
        %747 = vmatpush1.msra.mxu0 %v287
        %748 = vmatprep.subr.mxu0 0.0
        %749 = vmatpush1.msra.mxu0 %v288
        %750 = vmatprep.subr.mxu0 0.0
        %751 = vmatpush1.msra.mxu0 %v289
        %752 = vmatprep.subr.mxu0 0.0
        %753 = vmatpush1.msra.mxu0 %v290
        %754 = vmatprep.subr.mxu0 0.0
        %755 = vmatpush1.msra.mxu0 0.0
        %756 = vmatprep.subr.mxu0 0.0
        %757 = vmatpush1.msra.mxu0 0.0
        %758 = vmatprep.subr.mxu0 0.0
        %759 = vmatpush1.msra.mxu0 0.0
        %760 = vmatprep.subr.mxu0 0.0
        %761 = vmatpush1.msra.mxu0 0.0
        %762 = vmatprep.subr.mxu0 0.0
        %763 = vmatpush1.msra.mxu0 0.0
        %764 = vmatprep.subr.mxu0 0.0
        %765 = vmatpush1.msra.mxu0 0.0
        %766 = vmatprep.subr.mxu0 0.0
        %767 = vmatpush1.msra.mxu0 0.0
        %768 = vmatprep.subr.mxu0 0.0
        %769 = vmatpush1.msra.mxu0 0.0
        %770 = vmatprep.subr.mxu0 0.0
        %771 = vmatpush1.msra.mxu0 0.0
        %772 = vmatprep.subr.mxu0 0.0
        %773 = vmatpush1.msra.mxu0 0.0
        %774 = vmatprep.subr.mxu0 0.0
        %775 = vmatpush1.msra.mxu0 0.0
        %776 = vmatprep.subr.mxu0 0.0
        %777 = vmatpush1.msra.mxu0 0.0
        %778 = vmatprep.subr.mxu0 0.0
        %779 = vmatpush1.msra.mxu0 0.0
        %780 = vmatprep.subr.mxu0 0.0
        %781 = vmatpush1.msra.mxu0 0.0
        %782 = vmatprep.subr.mxu0 0.0
        %783 = vmatpush1.msra.mxu0 0.0
        %784 = vmatprep.subr.mxu0 0.0
        %785 = vmatpush1.msra.mxu0 0.0
        %786 = vmatprep.mubr.f32.mxu0 0.0
        %787 = vmatmul.mubr.f32.gmra.mrb[0].mxu0 %v721
        %v788 = vpop.f32.mrb[0].mxu0
        %v789 = vadd.f32 0.0, %v788
        %v790 = vpop.f32.mrb[0].mxu0
        %791 = vdwg.mxu0
        %v792 = vadd.f32 %v633, %v789
        %v793 = vtanh.pop %v792
        %v794 = vsub.f32 1.0, %v713
        %v795 = vmul.f32 %v794, %v635
        %v796 = vmul.f32 %v713, %v793
        %v797 = vadd.f32 %v795, %v796
        %s798 = scalar_lea.vmem %s235, 16 [#allocation9]
        %799 = vst [vmem:[%s798] sm:$0xff] %v797
        %s800 = scalar_lea.vmem %s205, 96 [#allocation3]
        %v801 = vld [vmem:[%s800] sm:$0xff]
        %v802 = vld [vmem:[%s800 + $0x8] sm:$0xff]
        %v803 = vld [vmem:[%s800 + $0x10] sm:$0xff]
        %v804 = vld [vmem:[%s800 + $0x18] sm:$0xff]
        %v805 = vmul.f32 %v804, %v797
        %806 = vmatprep.subr.mxu0 %v244
        %807 = vmatpush1.msra.mxu0 %v243
        %808 = vmatprep.subr.mxu0 %v246
        %809 = vmatpush1.msra.mxu0 %v245
        %810 = vmatprep.subr.mxu0 %v248
        %811 = vmatpush1.msra.mxu0 %v247
        %812 = vmatprep.subr.mxu0 %v250
        %813 = vmatpush1.msra.mxu0 %v249
        %814 = vmatprep.subr.mxu0 %v252
        %815 = vmatpush1.msra.mxu0 %v251
        %816 = vmatprep.subr.mxu0 %v254
        %817 = vmatpush1.msra.mxu0 %v253
        %818 = vmatprep.subr.mxu0 %v256
        %819 = vmatpush1.msra.mxu0 %v255
        %820 = vmatprep.subr.mxu0 %v258
        %821 = vmatpush1.msra.mxu0 %v257
        %822 = vmatprep.subr.mxu0 %v260
        %823 = vmatpush1.msra.mxu0 %v259
        %824 = vmatprep.subr.mxu0 %v262
        %825 = vmatpush1.msra.mxu0 %v261
        %826 = vmatprep.subr.mxu0 %v264
        %827 = vmatpush1.msra.mxu0 %v263
        %828 = vmatprep.subr.mxu0 %v266
        %829 = vmatpush1.msra.mxu0 %v265
        %830 = vmatprep.subr.mxu0 %v268
        %831 = vmatpush1.msra.mxu0 %v267
        %832 = vmatprep.subr.mxu0 %v270
        %833 = vmatpush1.msra.mxu0 %v269
        %834 = vmatprep.subr.mxu0 %v272
        %835 = vmatpush1.msra.mxu0 %v271
        %836 = vmatprep.subr.mxu0 %v274
        %837 = vmatpush1.msra.mxu0 %v273
        %838 = vmatprep.subr.mxu0 0.0
        %839 = vmatpush1.msra.mxu0 0.0
        %840 = vmatprep.subr.mxu0 0.0
        %841 = vmatpush1.msra.mxu0 0.0
        %842 = vmatprep.subr.mxu0 0.0
        %843 = vmatpush1.msra.mxu0 0.0
        %844 = vmatprep.subr.mxu0 0.0
        %845 = vmatpush1.msra.mxu0 0.0
        %846 = vmatprep.subr.mxu0 0.0
        %847 = vmatpush1.msra.mxu0 0.0
        %848 = vmatprep.subr.mxu0 0.0
        %849 = vmatpush1.msra.mxu0 0.0
        %850 = vmatprep.subr.mxu0 0.0
        %851 = vmatpush1.msra.mxu0 0.0
        %852 = vmatprep.subr.mxu0 0.0
        %853 = vmatpush1.msra.mxu0 0.0
        %854 = vmatprep.subr.mxu0 0.0
        %855 = vmatpush1.msra.mxu0 0.0
        %856 = vmatprep.subr.mxu0 0.0
        %857 = vmatpush1.msra.mxu0 0.0
        %858 = vmatprep.subr.mxu0 0.0
        %859 = vmatpush1.msra.mxu0 0.0
        %860 = vmatprep.subr.mxu0 0.0
        %861 = vmatpush1.msra.mxu0 0.0
        %862 = vmatprep.subr.mxu0 0.0
        %863 = vmatpush1.msra.mxu0 0.0
        %864 = vmatprep.subr.mxu0 0.0
        %865 = vmatpush1.msra.mxu0 0.0
        %866 = vmatprep.subr.mxu0 0.0
        %867 = vmatpush1.msra.mxu0 0.0
        %868 = vmatprep.subr.mxu0 0.0
        %869 = vmatpush1.msra.mxu0 0.0
        %870 = vmatprep.mubr.f32.mxu0 0.0
        %871 = vmatmul.mubr.f32.gmra.mrb[0].mxu0 %v805
        %v872 = vpop.f32.mrb[0].mxu0
        %v873 = vadd.f32 0.0, %v872
        %v874 = vpop.f32.mrb[0].mxu0
        %v875 = vadd.f32 0.0, %v874
        %876 = vdwg.mxu0
        %v877 = vadd.f32 %v801, %v873
        %v878 = vxor.u32 %v877, 2147483648
        %v879 = vmul.f32 %v878, 1.442695
        %v880 = vpow.pop %v879
        %v881 = vadd.f32 %v880, 1.0
        %v882 = vrcp.pop %v881
        %v883 = vmul.f32 1.0, %v882
        %v884 = vadd.f32 %v802, %v875
        %v885 = vxor.u32 %v884, 2147483648
        %v886 = vmul.f32 %v885, 1.442695
        %v887 = vpow.pop %v886
        %v888 = vadd.f32 %v887, 1.0
        %v889 = vrcp.pop %v888
        %v890 = vmul.f32 1.0, %v889
        %v891 = vmul.f32 %v890, %v805
        %892 = vmatprep.subr.mxu0 0.0
        %893 = vmatpush1.msra.mxu0 %v275
        %894 = vmatprep.subr.mxu0 0.0
        %895 = vmatpush1.msra.mxu0 %v276
        %896 = vmatprep.subr.mxu0 0.0
        %897 = vmatpush1.msra.mxu0 %v277
        %898 = vmatprep.subr.mxu0 0.0
        %899 = vmatpush1.msra.mxu0 %v278
        %900 = vmatprep.subr.mxu0 0.0
        %901 = vmatpush1.msra.mxu0 %v279
        %902 = vmatprep.subr.mxu0 0.0
        %903 = vmatpush1.msra.mxu0 %v280
        %904 = vmatprep.subr.mxu0 0.0
        %905 = vmatpush1.msra.mxu0 %v281
        %906 = vmatprep.subr.mxu0 0.0
        %907 = vmatpush1.msra.mxu0 %v282
        %908 = vmatprep.subr.mxu0 0.0
        %909 = vmatpush1.msra.mxu0 %v283
        %910 = vmatprep.subr.mxu0 0.0
        %911 = vmatpush1.msra.mxu0 %v284
        %912 = vmatprep.subr.mxu0 0.0
        %913 = vmatpush1.msra.mxu0 %v285
        %914 = vmatprep.subr.mxu0 0.0
        %915 = vmatpush1.msra.mxu0 %v286
        %916 = vmatprep.subr.mxu0 0.0
        %917 = vmatpush1.msra.mxu0 %v287
        %918 = vmatprep.subr.mxu0 0.0
        %919 = vmatpush1.msra.mxu0 %v288
        %920 = vmatprep.subr.mxu0 0.0
        %921 = vmatpush1.msra.mxu0 %v289
        %922 = vmatprep.subr.mxu0 0.0
        %923 = vmatpush1.msra.mxu0 %v290
        %924 = vmatprep.subr.mxu0 0.0
        %925 = vmatpush1.msra.mxu0 0.0
        %926 = vmatprep.subr.mxu0 0.0
        %927 = vmatpush1.msra.mxu0 0.0
        %928 = vmatprep.subr.mxu0 0.0
        %929 = vmatpush1.msra.mxu0 0.0
        %930 = vmatprep.subr.mxu0 0.0
        %931 = vmatpush1.msra.mxu0 0.0
        %932 = vmatprep.subr.mxu0 0.0
        %933 = vmatpush1.msra.mxu0 0.0
        %934 = vmatprep.subr.mxu0 0.0
        %935 = vmatpush1.msra.mxu0 0.0
        %936 = vmatprep.subr.mxu0 0.0
        %937 = vmatpush1.msra.mxu0 0.0
        %938 = vmatprep.subr.mxu0 0.0
        %939 = vmatpush1.msra.mxu0 0.0
        %940 = vmatprep.subr.mxu0 0.0
        %941 = vmatpush1.msra.mxu0 0.0
        %942 = vmatprep.subr.mxu0 0.0
        %943 = vmatpush1.msra.mxu0 0.0
        %944 = vmatprep.subr.mxu0 0.0
        %945 = vmatpush1.msra.mxu0 0.0
        %946 = vmatprep.subr.mxu0 0.0
        %947 = vmatpush1.msra.mxu0 0.0
        %948 = vmatprep.subr.mxu0 0.0
        %949 = vmatpush1.msra.mxu0 0.0
        %950 = vmatprep.subr.mxu0 0.0
        %951 = vmatpush1.msra.mxu0 0.0
        %952 = vmatprep.subr.mxu0 0.0
        %953 = vmatpush1.msra.mxu0 0.0
        %954 = vmatprep.subr.mxu0 0.0
        %955 = vmatpush1.msra.mxu0 0.0
        %956 = vmatprep.mubr.f32.mxu0 0.0
        %957 = vmatmul.mubr.f32.gmra.mrb[0].mxu0 %v891
        %v958 = vpop.f32.mrb[0].mxu0
        %v959 = vadd.f32 0.0, %v958
        %v960 = vpop.f32.mrb[0].mxu0
        %961 = vdwg.mxu0
        %v962 = vadd.f32 %v803, %v959
        %v963 = vtanh.pop %v962
        %v964 = vsub.f32 1.0, %v883
        %v965 = vmul.f32 %v964, %v805
        %v966 = vmul.f32 %v883, %v963
        %v967 = vadd.f32 %v965, %v966
        %s968 = scalar_lea.vmem %s235, 24 [#allocation9]
        %969 = vst [vmem:[%s968] sm:$0xff] %v967
        %970 = vst [vmem:[#allocation2] sm:$0xff] %v967
        %s971 = sand.u32 %s113, 1
        %s972 = scalar_lea.sflag [#allocation5], %s971
        %s973 = sand.u32 %s113, 1
        %s974 = smul.addr %s973, 32
        %s975 = scalar_lea.vmem [#allocation9], %s974
        // Predicated region
        $region49: #{grud_forward.1} parent=31 // pred_check
          %p976 = pneg %p123
        $region50: #{grud_forward.1} parent=31 // pred_check_branch
          %978 = sbr.rel (%p976) target = $region52
        $region51: #{grud_forward.1} parent=31 // pred_region
          %s979 = smul.u32 4, %s26
          %s981 = ssub.s32 512, 512
          %982 = vsyncadd %s972, %s981
          %s983 = sadd.s32 %s25, %s979
          %s984 = smul.addr %s983, 128
          %s985 = scalar_lea.hbm %s3, %s984
          %s986 = sshll.u32 %s975, 4
          %s987 = int_to_ptr.vmem [resolvable:$true] %s986
          %992 = dma.vmem_to_hbm [thread:$0]  %s987, 512, %s985, %s972, 128, 128, 8
        $region52: #{grud_forward.1} parent=31 // pred_fallthru
          _
      $region32: #{grud_forward.1} parent=5 // pred_fallthru
        _
      %p993 = scmp.le.s32.totalorder 2, %s16
      // Predicated region
      $region53: #{grud_forward.1} parent=5 // pred_check
        %p994 = pneg %p993
      $region54: #{grud_forward.1} parent=5 // pred_check_branch
        %996 = sbr.rel (%p994) target = $region56
      $region55: #{grud_forward.1} parent=5 // pred_region
        %s997 = ssub.s32 %s16, 2
        // Predicated region
        $region57: #{grud_forward.1} parent=55 // pred_check
          %p998 = pneg %p129
        $region58: #{grud_forward.1} parent=55 // pred_check_branch
          %1000 = sbr.rel (%p998) target = $region60
        $region59: #{grud_forward.1} parent=55 // pred_region
          %s1001 = sand.u32 %s114, 1
          %s1002 = scalar_lea.sflag [#allocation5], %s1001
          %s1003 = sand.u32 %s114, 1
          %s1004 = smul.addr %s1003, 32
          %s1005 = scalar_lea.vmem [#allocation9], %s1004
          %1006 = dma.done %s1002, 512
        $region60: #{grud_forward.1} parent=55 // pred_fallthru
          _
      $region56: #{grud_forward.1} parent=5 // pred_fallthru
        _
    $region6: #{grud_forward.1} parent=1 // loop_footer
      %s20 = sadd.s32 1, %s16
    $region7: #{grud_forward.1} parent=1 // loop_footer_branch
      %15 = sbr.rel target = $region3
    $region8: #{grud_forward.1} parent=1 // loop_exit
      _
    %1007 = vsyncpa [#allocation4], 1
    %s1008 = scalar_lea.sflag [#allocation4], 1
    %1009 = vsyncpa %s1008, 1
    %1010 = vsyncpa [#allocation7], 1
    %1011 = vsyncpa [#allocation5], 1
    %s1012 = scalar_lea.sflag [#allocation5], 1
    %1013 = vsyncpa %s1012, 1

</llo_original>
